<compile_context>
chip_gen: v7x
topology: tpu7x:2x2x1
jax: 0.10.0
libtpu: 0.0.40
codegen_flags: <defaults>
</compile_context>

<pallas_src>
import numpy as np
import jax
import jax.numpy as jnp
from jax.experimental import pallas as pl
from jax.experimental.pallas import tpu as pltpu


def _round_up(v: int, m: int) -> int:
    return ((v + m - 1) // m) * m


def _sublane(dtype) -> int:
    # Sublane packing multiple: 8 (f32), 16 (bf16), 32 (int8/fp8).
    return max(8, 32 // jnp.dtype(dtype).itemsize)


def _pool_windows(in_size: int, out_size: int):
    """PyTorch adaptive-avg-pool 1D windows: 0/1 mask (out,in) and window sizes (out,)."""
    mask = np.zeros((out_size, in_size), dtype=np.float32)
    counts = np.zeros((out_size,), dtype=np.float32)
    for o in range(out_size):
        s = (o * in_size) // out_size
        e = -((-(o + 1) * in_size) // out_size)  # ceil((o+1)*in/out)
        mask[o, s:e] = 1.0
        counts[o] = e - s
    return mask, counts


def _vmem_budget_and_cap():
    """(working-set budget for tile selection, cap for vmem_limit_bytes)."""
    phys = 128 << 20
    try:
        info = pltpu.get_tpu_info()
        cap = int(getattr(info, "vmem_capacity_bytes", 0) or 0)
        if cap > 0:
            phys = cap
    except Exception:
        pass
    budget = min(int(phys * 0.35), 24 << 20)     # ~22 MiB on v7x, 24 MiB on v5e/v6e
    limit_cap = min(int(phys * 0.75), 48 << 20)  # never raise scoped VMEM past ~48 MiB
    return budget, limit_cap


def _choose_row_tile(nc: int, K: int, Mp: int, dtype, budget: int) -> int:
    """Largest legal row tile whose pipelined working set fits the VMEM budget."""
    it = jnp.dtype(dtype).itemsize
    sub = _sublane(dtype)
    K_pad = _round_up(K, 128)                    # lane padding of the x block
    p_bytes = 2 * _round_up(K, sub) * Mp * it    # pooling mask (counted double-buffered)
    scale_bytes = 2 * 8 * Mp * 4                 # f32 scale row (sublane-padded)
    per_row = 2 * (K_pad + Mp) * it              # double-buffered x row + out row
    avail = budget - p_bytes - scale_bytes
    max_ct = max(sub, avail // per_row) if avail > 0 else sub
    if nc <= max_ct:
        if nc >= 2 * sub:
            # Guarantee >= 2 grid steps so v7x megacore uses both TensorCores.
            return int(_round_up(-(-nc // 2), sub))
        return int(nc)                           # full extent: always layout-legal
    if max_ct >= 256:
        return int((max_ct // 128) * 128)        # MXU/lane friendly row-tile
    return int(max(sub, (max_ct // sub) * sub))


def _gap_kernel(p_ref, scale_ref, x_ref, o_ref):
    # p_ref: (K, Mp) 0/1 window mask (x dtype); scale_ref: (1, Mp) f32 1/(kh*kw);
    # x_ref: (CT, K); o_ref: (CT, Mp).  Sum-then-scale == PyTorch adaptive avg pool.
    acc = jnp.dot(x_ref[...], p_ref[...], preferred_element_type=jnp.float32)
    o_ref[...] = (acc * scale_ref[...]).astype(o_ref.dtype)


def gap_pallas(x: jax.Array, H: int, W: int) -> jax.Array:
    """Adaptive average pool of NCHW input x to output spatial size (H, W)."""
    if not jnp.issubdtype(x.dtype, jnp.floating):
        # TODO(synk): integer inputs are out of spec for AdaptiveAvgPool2d; compute in f32.
        x = x.astype(jnp.float32)

    N, C, IH, IW = x.shape
    K = IH * IW
    M = H * W
    Mp = _round_up(M, 128)                       # lane-dense output -> unmasked stores
    nc = N * C

    mh, ch = _pool_windows(IH, H)
    mw, cw = _pool_windows(IW, W)
    p_np = np.zeros((K, Mp), dtype=np.float32)
    p_np[:, :M] = np.kron(mh, mw).T              # (IH*IW, H*W) 0/1 membership
    scale_np = np.zeros((1, Mp), dtype=np.float32)
    scale_np[0, :M] = np.kron(1.0 / ch, 1.0 / cw)

    p = jnp.asarray(p_np, dtype=x.dtype)         # 0/1 values: exact even in bf16
    scale = jnp.asarray(scale_np)                # exact f32 normalization

    x_flat = x.reshape(nc, K)                    # free reshape for contiguous NCHW

    budget, limit_cap = _vmem_budget_and_cap()
    CT = _choose_row_tile(nc, K, Mp, x.dtype, budget)
    grid = (pl.cdiv(nc, CT),)

    it = jnp.dtype(x.dtype).itemsize
    ws = (2 * _round_up(K, _sublane(x.dtype)) * Mp * it   # pooling mask
          + 2 * 8 * Mp * 4                                # scale row
          + 2 * CT * (_round_up(K, 128) + Mp) * it)       # x + out double-buffers
    vmem_limit = int(min(limit_cap, max(ws + (8 << 20), 32 << 20)))

    def build(single_buffer_p: bool):
        p_kwargs = {"pipeline_mode": pl.Buffered(1)} if single_buffer_p else {}
        return pl.pallas_call(
            _gap_kernel,
            out_shape=jax.ShapeDtypeStruct((nc, Mp), x.dtype),
            grid_spec=pltpu.PrefetchScalarGridSpec(
                num_scalar_prefetch=0,
                grid=grid,
                in_specs=[
                    pl.BlockSpec((K, Mp), lambda r: (0, 0), **p_kwargs),  # resident mask
                    pl.BlockSpec((1, Mp), lambda r: (0, 0)),              # resident scale
                    pl.BlockSpec((CT, K), lambda r: (r, 0)),              # row tile
                ],
                out_specs=pl.BlockSpec((CT, Mp), lambda r: (r, 0)),
            ),
            compiler_params=pltpu.CompilerParams(
                dimension_semantics=("parallel",),
                vmem_limit_bytes=vmem_limit,
            ),
        )

    # TODO(synk): for large pooled outputs (H*W >~ 64) a separable two-matmul
    # (contract IW with Pw^T, then IH with Ph^T) would keep the kernel memory
    # bound; GAP outputs are small, so the dense-kron single matmul is used.
    out_flat = None
    try:
        out_flat = jax.block_until_ready(build(True)(p, scale, x_flat))
    except Exception:
        out_flat = None
    if out_flat is None:
        out_flat = build(False)(p, scale, x_flat)

    return out_flat[:, :M].reshape(N, C, H, W)


def gap_reference(x: jax.Array, H: int, W: int) -> jax.Array:
    """Pure-JAX reference of torch.nn.AdaptiveAvgPool2d((H, W)) on NCHW input."""
    _, _, IH, IW = x.shape
    mh, ch = _pool_windows(IH, H)
    mw, cw = _pool_windows(IW, W)
    ph = jnp.asarray(mh / ch[:, None])
    pw = jnp.asarray(mw / cw[:, None])
    out = jnp.einsum("oi,nciw,pw->ncop", ph, x.astype(jnp.float32), pw)
    return out.astype(x.dtype)


if __name__ == "__main__":
    key = jax.random.PRNGKey(0)

    # Case 1: f32, uneven adaptive-pool windows (output does not divide input).
    N, C, IH, IW = 2, 4, 16, 16
    H_out, W_out = 5, 7
    x = jax.random.normal(key, (N, C, IH, IW), dtype=jnp.float32)
    out = jax.block_until_ready(gap_pallas(x, H_out, W_out))
    ref = gap_reference(x, H_out, W_out)
    assert out.shape == (N, C, H_out, W_out)
    np.testing.assert_allclose(np.asarray(out), np.asarray(ref), rtol=1e-5, atol=1e-5)

    # Case 2: bf16, more channels -> multi-step grid with a partial edge block.
    x2 = jax.random.normal(jax.random.PRNGKey(1), (2, 100, 14, 14), dtype=jnp.bfloat16)
    out2 = jax.block_until_ready(gap_pallas(x2, 4, 4))
    ref2 = gap_reference(x2, 4, 4)
    np.testing.assert_allclose(np.asarray(out2.astype(jnp.float32)),
                               np.asarray(ref2.astype(jnp.float32)),
                               rtol=2e-2, atol=2e-2)

    print("KERNEL_OK")
</pallas_src>

<mosaic_0001>
module attributes {stable_mosaic.version = 11 : i64} {
  func.func @_gap_kernel(%arg0: i32, %arg1: memref<256x128xf32, #tpu.memory_space<vmem>>, %arg2: memref<1x128xf32, #tpu.memory_space<vmem>>, %arg3: memref<8x256xf32, #tpu.memory_space<vmem>>, %arg4: memref<8x128xf32, #tpu.memory_space<vmem>>) attributes {dimension_semantics = [#tpu.dimension_semantics<parallel>], iteration_bounds = array<i64: 1>, scalar_prefetch = 0 : i64, scratch_operands = 0 : i64, tpu.core_type = #tpu.core_type<tc>, window_params = [{pipeline_mode = #tpu.pipeline_mode<synchronous>, transform_indices = @transform_0, window_bounds = array<i64: 256, 128>}, {pipeline_mode = #tpu.pipeline_mode<synchronous>, transform_indices = @transform_1, window_bounds = array<i64: 1, 128>}, {transform_indices = @transform_2, window_bounds = array<i64: 8, 256>}, {transform_indices = @transform_3, window_bounds = array<i64: 8, 128>}]} {
    %c0 = arith.constant 0 : index
    %c0_0 = arith.constant 0 : index
    %0 = vector.load %arg3[%c0, %c0_0] : memref<8x256xf32, #tpu.memory_space<vmem>>, vector<8x256xf32>
    %c0_1 = arith.constant 0 : index
    %c0_2 = arith.constant 0 : index
    %1 = vector.load %arg1[%c0_1, %c0_2] : memref<256x128xf32, #tpu.memory_space<vmem>>, vector<256x128xf32>
    %cst = arith.constant dense<0.000000e+00> : vector<8x128xf32>
    %2 = tpu.matmul %0, %1, %cst {dimension_numbers = #tpu.dot_dimension_numbers<[1], [0], [0], [1], [0, 0, 1, 1], [], []>} : vector<8x256xf32>, vector<256x128xf32>, vector<8x128xf32> -> vector<8x128xf32>
    %c0_3 = arith.constant 0 : index
    %c0_4 = arith.constant 0 : index
    %3 = vector.load %arg2[%c0_3, %c0_4] : memref<1x128xf32, #tpu.memory_space<vmem>>, vector<1x128xf32>
    %4 = vector.broadcast %3 : vector<1x128xf32> to vector<8x128xf32>
    %5 = arith.mulf %2, %4 : vector<8x128xf32>
    %c0_5 = arith.constant 0 : index
    %c0_6 = arith.constant 0 : index
    %6 = vector.load %arg4[%c0_5, %c0_6] : memref<8x128xf32, #tpu.memory_space<vmem>>, vector<8x128xf32>
    tpu.vector_store %arg4[%c0_5, %c0_6], %5 {strides = array<i32>} : memref<8x128xf32, #tpu.memory_space<vmem>>, vector<8x128xf32>,
    return
  }
  func.func @transform_0(%arg0: i32) -> (i32, i32) {
    %c0_i32 = arith.constant 0 : i32
    %c0_i32_0 = arith.constant 0 : i32
    %c0_i32_1 = arith.constant 0 : i32
    return %c0_i32, %c0_i32_0 : i32, i32
  }
  func.func @transform_1(%arg0: i32) -> (i32, i32) {
    %c0_i32 = arith.constant 0 : i32
    %c0_i32_0 = arith.constant 0 : i32
    %c0_i32_1 = arith.constant 0 : i32
    return %c0_i32, %c0_i32_0 : i32, i32
  }
  func.func @transform_2(%arg0: i32) -> (i32, i32) {
    %c0_i32 = arith.constant 0 : i32
    %c0_i32_0 = arith.constant 0 : i32
    return %arg0, %c0_i32 : i32, i32
  }
  func.func @transform_3(%arg0: i32) -> (i32, i32) {
    %c0_i32 = arith.constant 0 : i32
    %c0_i32_0 = arith.constant 0 : i32
    return %arg0, %c0_i32 : i32, i32
  }
}

module attributes {stable_mosaic.version = 11 : i64} {
  func.func @_gap_kernel(%arg0: i32, %arg1: memref<256x128xf32, #tpu.memory_space<vmem>>, %arg2: memref<1x128xf32, #tpu.memory_space<vmem>>, %arg3: memref<8x256xf32, #tpu.memory_space<vmem>>, %arg4: memref<8x128xf32, #tpu.memory_space<vmem>>) attributes {dimension_semantics = [#tpu.dimension_semantics<parallel>], iteration_bounds = array<i64: 1>, scalar_prefetch = 0 : i64, scratch_operands = 0 : i64, tpu.core_type = #tpu.core_type<tc>, window_params = [{pipeline_mode = #tpu.pipeline_mode<synchronous>, transform_indices = @transform_0, window_bounds = array<i64: 256, 128>}, {pipeline_mode = #tpu.pipeline_mode<synchronous>, transform_indices = @transform_1, window_bounds = array<i64: 1, 128>}, {transform_indices = @transform_2, window_bounds = array<i64: 8, 256>}, {transform_indices = @transform_3, window_bounds = array<i64: 8, 128>}]} {
    %c0 = arith.constant 0 : index
    %c0_0 = arith.constant 0 : index
    %0 = vector.load %arg3[%c0, %c0_0] : memref<8x256xf32, #tpu.memory_space<vmem>>, vector<8x256xf32>
    %c0_1 = arith.constant 0 : index
    %c0_2 = arith.constant 0 : index
    %1 = vector.load %arg1[%c0_1, %c0_2] : memref<256x128xf32, #tpu.memory_space<vmem>>, vector<256x128xf32>
    %cst = arith.constant dense<0.000000e+00> : vector<8x128xf32>
    %2 = tpu.matmul %0, %1, %cst {dimension_numbers = #tpu.dot_dimension_numbers<[1], [0], [0], [1], [0, 0, 1, 1], [], []>} : vector<8x256xf32>, vector<256x128xf32>, vector<8x128xf32> -> vector<8x128xf32>
    %c0_3 = arith.constant 0 : index
    %c0_4 = arith.constant 0 : index
    %3 = vector.load %arg2[%c0_3, %c0_4] : memref<1x128xf32, #tpu.memory_space<vmem>>, vector<1x128xf32>
    %4 = vector.broadcast %3 : vector<1x128xf32> to vector<8x128xf32>
    %5 = arith.mulf %2, %4 : vector<8x128xf32>
    %c0_5 = arith.constant 0 : index
    %c0_6 = arith.constant 0 : index
    %6 = vector.load %arg4[%c0_5, %c0_6] : memref<8x128xf32, #tpu.memory_space<vmem>>, vector<8x128xf32>
    tpu.vector_store %arg4[%c0_5, %c0_6], %5 {strides = array<i32>} : memref<8x128xf32, #tpu.memory_space<vmem>>, vector<8x128xf32>,
    return
  }
  func.func @transform_0(%arg0: i32) -> (i32, i32) {
    %c0_i32 = arith.constant 0 : i32
    %c0_i32_0 = arith.constant 0 : i32
    %c0_i32_1 = arith.constant 0 : i32
    return %c0_i32, %c0_i32_0 : i32, i32
  }
  func.func @transform_1(%arg0: i32) -> (i32, i32) {
    %c0_i32 = arith.constant 0 : i32
    %c0_i32_0 = arith.constant 0 : i32
    %c0_i32_1 = arith.constant 0 : i32
    return %c0_i32, %c0_i32_0 : i32, i32
  }
  func.func @transform_2(%arg0: i32) -> (i32, i32) {
    %c0_i32 = arith.constant 0 : i32
    %c0_i32_0 = arith.constant 0 : i32
    return %arg0, %c0_i32 : i32, i32
  }
  func.func @transform_3(%arg0: i32) -> (i32, i32) {
    %c0_i32 = arith.constant 0 : i32
    %c0_i32_0 = arith.constant 0 : i32
    return %arg0, %c0_i32 : i32, i32
  }
}

</mosaic_0001>

<llo_original>
// kernel: tpu_custom_call.1
$region0: #{tpu_custom_call.1}
  #allocation0 [shape = 'u32[]', space=smem, size = 0x4, offset = 0x4, fixed_abs, tag = 'smem constant byte address 0x4 - core index']
  #allocation1 [shape = 'u32[144,128]{1,0:T(1,128)}', space=vmem, size = 0x12000, scoped, tag = 'internal scratch']
  %s0 = inlined_call_operand.hbm [shape: f32[256,128], index: 0, kind: input, shape index: {}]
  %s1 = inlined_call_operand.vmem [shape: f32[1,128], index: 1, kind: input, shape index: {}]
  %s2 = inlined_call_operand.hbm [shape: f32[8,256], index: 2, kind: input, shape index: {}]
  %s3 = inlined_call_operand.hbm [shape: f32[8,128], index: 3, kind: output, shape index: {}]
  %s4 = sld [smem:[#allocation0]]
  $region30: #{tpu_custom_call.1} parent=0
    _
  %s6 = ssub.s32 1, %s4
  %s7 = scalar_select 0, %s6, %s4
  $region1: #{tpu_custom_call.1} parent=0
    #allocation2 [shape = 'u8[131072]{0}', space=vmem, size = 0x20000, scoped, tag = 'input window, operand 0, single buffered']
    #allocation3 [shape = 's32[1]{0}', space=sflag, size = 0x4, scoped, tag = 'scoped memory for tpu_custom_call.1']
    #allocation4 [shape = 's32[1]{0}', space=sflag, size = 0x4, scoped, tag = 'scoped memory for tpu_custom_call.1']
    #allocation5 [shape = 'u8[8192]{0}', space=vmem, size = 0x2000, scoped, tag = 'input window, operand 2, single buffered']
    #allocation6 [shape = 's32[1]{0}', space=sflag, size = 0x4, scoped, tag = 'scoped memory for tpu_custom_call.1']
    #allocation7 [shape = 'u8[4096]{0}', space=vmem, size = 0x1000, scoped, tag = 'output window, operand 0, single buffered']
    %8 = vsyncpa [#allocation3], 0
    %9 = vsyncpa [#allocation6], 0
    %10 = vsyncpa [#allocation4], 0
    // Predicated region
    $region2: #{tpu_custom_call.1} parent=1 // pred_check
      _
    $region3: #{tpu_custom_call.1} parent=1 // pred_check_branch
      %12 = sbr.rel (0) target = $region5
    $region4: #{tpu_custom_call.1} parent=1 // pred_region
      %s14 = ssub.s32 4096, 4096
      %15 = vsyncadd [#allocation3], %s14
      %s16 = sshll.u32 [#allocation2], 4
      %s17 = int_to_ptr.vmem [resolvable:$true] %s16
      %22 = dma.hbm_to_vmem [thread:$0]  %s0, 4096, %s17, [#allocation3], 128, 128, 8
    $region5: #{tpu_custom_call.1} parent=1 // pred_fallthru
      _
    // Predicated region
    $region6: #{tpu_custom_call.1} parent=1 // pred_check
      _
    $region7: #{tpu_custom_call.1} parent=1 // pred_check_branch
      %24 = sbr.rel (0) target = $region9
    $region8: #{tpu_custom_call.1} parent=1 // pred_region
      _
    $region9: #{tpu_custom_call.1} parent=1 // pred_fallthru
      _
    // Predicated region
    $region10: #{tpu_custom_call.1} parent=1 // pred_check
      _
    $region11: #{tpu_custom_call.1} parent=1 // pred_check_branch
      %26 = sbr.rel (0) target = $region13
    $region12: #{tpu_custom_call.1} parent=1 // pred_region
      %s28 = ssub.s32 256, 256
      %29 = vsyncadd [#allocation6], %s28
      %s31 = sshll.u32 [#allocation5], 4
      %s32 = int_to_ptr.vmem [resolvable:$true] %s31
      %34 = dma.hbm_to_vmem [thread:$0]  %s2, 256, %s32, [#allocation6]
    $region13: #{tpu_custom_call.1} parent=1 // pred_fallthru
      _
    // Predicated region
    $region14: #{tpu_custom_call.1} parent=1 // pred_check
      _
    $region15: #{tpu_custom_call.1} parent=1 // pred_check_branch
      %36 = sbr.rel (0) target = $region17
    $region16: #{tpu_custom_call.1} parent=1 // pred_region
      %37 = dma.done [#allocation3], 4096
    $region17: #{tpu_custom_call.1} parent=1 // pred_fallthru
      _
    // Predicated region
    $region18: #{tpu_custom_call.1} parent=1 // pred_check
      _
    $region19: #{tpu_custom_call.1} parent=1 // pred_check_branch
      %39 = sbr.rel (0) target = $region21
    $region20: #{tpu_custom_call.1} parent=1 // pred_region
      %40 = dma.done [#allocation6], 256
    $region21: #{tpu_custom_call.1} parent=1 // pred_fallthru
      _
    %v41 = vld [vmem:[#allocation5] sm:$0xff]
    %v42 = vld [vmem:[#allocation5 + $0x8] sm:$0xff]
    %v43 = vld [vmem:[#allocation2] sm:$0xff]
    %v44 = vld [vmem:[#allocation2 + $0x8] sm:$0xff]
    %v45 = vld [vmem:[#allocation2 + $0x10] sm:$0xff]
    %v46 = vld [vmem:[#allocation2 + $0x18] sm:$0xff]
    %v47 = vld [vmem:[#allocation2 + $0x20] sm:$0xff]
    %v48 = vld [vmem:[#allocation2 + $0x28] sm:$0xff]
    %v49 = vld [vmem:[#allocation2 + $0x30] sm:$0xff]
    %v50 = vld [vmem:[#allocation2 + $0x38] sm:$0xff]
    %v51 = vld [vmem:[#allocation2 + $0x40] sm:$0xff]
    %v52 = vld [vmem:[#allocation2 + $0x48] sm:$0xff]
    %v53 = vld [vmem:[#allocation2 + $0x50] sm:$0xff]
    %v54 = vld [vmem:[#allocation2 + $0x58] sm:$0xff]
    %v55 = vld [vmem:[#allocation2 + $0x60] sm:$0xff]
    %v56 = vld [vmem:[#allocation2 + $0x68] sm:$0xff]
    %v57 = vld [vmem:[#allocation2 + $0x70] sm:$0xff]
    %v58 = vld [vmem:[#allocation2 + $0x78] sm:$0xff]
    %v59 = vld [vmem:[#allocation2 + $0x80] sm:$0xff]
    %v60 = vld [vmem:[#allocation2 + $0x88] sm:$0xff]
    %v61 = vld [vmem:[#allocation2 + $0x90] sm:$0xff]
    %v62 = vld [vmem:[#allocation2 + $0x98] sm:$0xff]
    %v63 = vld [vmem:[#allocation2 + $0xa0] sm:$0xff]
    %v64 = vld [vmem:[#allocation2 + $0xa8] sm:$0xff]
    %v65 = vld [vmem:[#allocation2 + $0xb0] sm:$0xff]
    %v66 = vld [vmem:[#allocation2 + $0xb8] sm:$0xff]
    %v67 = vld [vmem:[#allocation2 + $0xc0] sm:$0xff]
    %v68 = vld [vmem:[#allocation2 + $0xc8] sm:$0xff]
    %v69 = vld [vmem:[#allocation2 + $0xd0] sm:$0xff]
    %v70 = vld [vmem:[#allocation2 + $0xd8] sm:$0xff]
    %v71 = vld [vmem:[#allocation2 + $0xe0] sm:$0xff]
    %v72 = vld [vmem:[#allocation2 + $0xe8] sm:$0xff]
    %v73 = vld [vmem:[#allocation2 + $0xf0] sm:$0xff]
    %v74 = vld [vmem:[#allocation2 + $0xf8] sm:$0xff]
    %75 = vmatprep.subr.mxu0 0.0
    %76 = vmatpush1.msra.mxu0 %v43
    %77 = vmatprep.subr.mxu0 0.0
    %78 = vmatpush1.msra.mxu0 %v44
    %79 = vmatprep.subr.mxu0 0.0
    %80 = vmatpush1.msra.mxu0 %v45
    %81 = vmatprep.subr.mxu0 0.0
    %82 = vmatpush1.msra.mxu0 %v46
    %83 = vmatprep.subr.mxu0 0.0
    %84 = vmatpush1.msra.mxu0 %v47
    %85 = vmatprep.subr.mxu0 0.0
    %86 = vmatpush1.msra.mxu0 %v48
    %87 = vmatprep.subr.mxu0 0.0
    %88 = vmatpush1.msra.mxu0 %v49
    %89 = vmatprep.subr.mxu0 0.0
    %90 = vmatpush1.msra.mxu0 %v50
    %91 = vmatprep.subr.mxu0 0.0
    %92 = vmatpush1.msra.mxu0 %v51
    %93 = vmatprep.subr.mxu0 0.0
    %94 = vmatpush1.msra.mxu0 %v52
    %95 = vmatprep.subr.mxu0 0.0
    %96 = vmatpush1.msra.mxu0 %v53
    %97 = vmatprep.subr.mxu0 0.0
    %98 = vmatpush1.msra.mxu0 %v54
    %99 = vmatprep.subr.mxu0 0.0
    %100 = vmatpush1.msra.mxu0 %v55
    %101 = vmatprep.subr.mxu0 0.0
    %102 = vmatpush1.msra.mxu0 %v56
    %103 = vmatprep.subr.mxu0 0.0
    %104 = vmatpush1.msra.mxu0 %v57
    %105 = vmatprep.subr.mxu0 0.0
    %106 = vmatpush1.msra.mxu0 %v58
    %107 = vmatprep.subr.mxu0 0.0
    %108 = vmatpush1.msra.mxu0 %v59
    %109 = vmatprep.subr.mxu0 0.0
    %110 = vmatpush1.msra.mxu0 %v60
    %111 = vmatprep.subr.mxu0 0.0
    %112 = vmatpush1.msra.mxu0 %v61
    %113 = vmatprep.subr.mxu0 0.0
    %114 = vmatpush1.msra.mxu0 %v62
    %115 = vmatprep.subr.mxu0 0.0
    %116 = vmatpush1.msra.mxu0 %v63
    %117 = vmatprep.subr.mxu0 0.0
    %118 = vmatpush1.msra.mxu0 %v64
    %119 = vmatprep.subr.mxu0 0.0
    %120 = vmatpush1.msra.mxu0 %v65
    %121 = vmatprep.subr.mxu0 0.0
    %122 = vmatpush1.msra.mxu0 %v66
    %123 = vmatprep.subr.mxu0 0.0
    %124 = vmatpush1.msra.mxu0 %v67
    %125 = vmatprep.subr.mxu0 0.0
    %126 = vmatpush1.msra.mxu0 %v68
    %127 = vmatprep.subr.mxu0 0.0
    %128 = vmatpush1.msra.mxu0 %v69
    %129 = vmatprep.subr.mxu0 0.0
    %130 = vmatpush1.msra.mxu0 %v70
    %131 = vmatprep.subr.mxu0 0.0
    %132 = vmatpush1.msra.mxu0 %v71
    %133 = vmatprep.subr.mxu0 0.0
    %134 = vmatpush1.msra.mxu0 %v72
    %135 = vmatprep.subr.mxu0 0.0
    %136 = vmatpush1.msra.mxu0 %v73
    %137 = vmatprep.subr.mxu0 0.0
    %138 = vmatpush1.msra.mxu0 %v74
    %139 = vmatprep.mubr.f32.mxu0 %v42
    %140 = vmatmul.mubr.f32.gmra.mrb[0].mxu0 %v41
    %v141 = vpop.f32.mrb[0].mxu0
    %v142 = vadd.f32 0.0, %v141
    %v143 = vpop.f32.mrb[0].mxu0
    %144 = vdwg.mxu0
    %v145 = vld [vmem:[%s1] sm:$0x1]
    %v147 = vlaneseq
    %v148 = vshrl.u32 %v147, 7
    %v149 = vsub.s32 0, %v148
    %v150 = vrot.slane %v145, %v149
    %v152 = vmul.f32 %v142, %v150
    %153 = vst [vmem:[#allocation7] sm:$0xff] %v152
    // Predicated region
    $region22: #{tpu_custom_call.1} parent=1 // pred_check
      _
    $region23: #{tpu_custom_call.1} parent=1 // pred_check_branch
      %155 = sbr.rel (0) target = $region25
    $region24: #{tpu_custom_call.1} parent=1 // pred_region
      %s157 = ssub.s32 128, 128
      %158 = vsyncadd [#allocation4], %s157
      %s160 = sshll.u32 [#allocation7], 4
      %s161 = int_to_ptr.vmem [resolvable:$true] %s160
      %163 = dma.vmem_to_hbm [thread:$0]  %s161, 128, %s3, [#allocation4]
    $region25: #{tpu_custom_call.1} parent=1 // pred_fallthru
      _
    // Predicated region
    $region26: #{tpu_custom_call.1} parent=1 // pred_check
      _
    $region27: #{tpu_custom_call.1} parent=1 // pred_check_branch
      %165 = sbr.rel (0) target = $region29
    $region28: #{tpu_custom_call.1} parent=1 // pred_region
      %166 = dma.done [#allocation4], 128
    $region29: #{tpu_custom_call.1} parent=1 // pred_fallthru
      _
    %167 = vsyncpa [#allocation3], 1
    %168 = vsyncpa [#allocation6], 1
    %169 = vsyncpa [#allocation4], 1

// kernel: tpu_custom_call.1
$region0: #{tpu_custom_call.1}
  #allocation0 [shape = 'u32[]', space=smem, size = 0x4, offset = 0x4, fixed_abs, tag = 'smem constant byte address 0x4 - core index']
  #allocation1 [shape = 'u32[144,128]{1,0:T(1,128)}', space=vmem, size = 0x12000, scoped, tag = 'internal scratch']
  %s0 = inlined_call_operand.hbm [shape: f32[256,128], index: 0, kind: input, shape index: {}]
  %s1 = inlined_call_operand.vmem [shape: f32[1,128], index: 1, kind: input, shape index: {}]
  %s2 = inlined_call_operand.hbm [shape: f32[8,256], index: 2, kind: input, shape index: {}]
  %s3 = inlined_call_operand.hbm [shape: f32[8,128], index: 3, kind: output, shape index: {}]
  %s4 = sld [smem:[#allocation0]]
  $region30: #{tpu_custom_call.1} parent=0
    _
  %s6 = ssub.s32 1, %s4
  %s7 = scalar_select 0, %s6, %s4
  $region1: #{tpu_custom_call.1} parent=0
    #allocation2 [shape = 'u8[131072]{0}', space=vmem, size = 0x20000, scoped, tag = 'input window, operand 0, single buffered']
    #allocation3 [shape = 's32[1]{0}', space=sflag, size = 0x4, scoped, tag = 'scoped memory for tpu_custom_call.1']
    #allocation4 [shape = 's32[1]{0}', space=sflag, size = 0x4, scoped, tag = 'scoped memory for tpu_custom_call.1']
    #allocation5 [shape = 'u8[8192]{0}', space=vmem, size = 0x2000, scoped, tag = 'input window, operand 2, single buffered']
    #allocation6 [shape = 's32[1]{0}', space=sflag, size = 0x4, scoped, tag = 'scoped memory for tpu_custom_call.1']
    #allocation7 [shape = 'u8[4096]{0}', space=vmem, size = 0x1000, scoped, tag = 'output window, operand 0, single buffered']
    %8 = vsyncpa [#allocation3], 0
    %9 = vsyncpa [#allocation6], 0
    %10 = vsyncpa [#allocation4], 0
    // Predicated region
    $region2: #{tpu_custom_call.1} parent=1 // pred_check
      _
    $region3: #{tpu_custom_call.1} parent=1 // pred_check_branch
      %12 = sbr.rel (0) target = $region5
    $region4: #{tpu_custom_call.1} parent=1 // pred_region
      %s14 = ssub.s32 4096, 4096
      %15 = vsyncadd [#allocation3], %s14
      %s16 = sshll.u32 [#allocation2], 4
      %s17 = int_to_ptr.vmem [resolvable:$true] %s16
      %22 = dma.hbm_to_vmem [thread:$0]  %s0, 4096, %s17, [#allocation3], 128, 128, 8
    $region5: #{tpu_custom_call.1} parent=1 // pred_fallthru
      _
    // Predicated region
    $region6: #{tpu_custom_call.1} parent=1 // pred_check
      _
    $region7: #{tpu_custom_call.1} parent=1 // pred_check_branch
      %24 = sbr.rel (0) target = $region9
    $region8: #{tpu_custom_call.1} parent=1 // pred_region
      _
    $region9: #{tpu_custom_call.1} parent=1 // pred_fallthru
      _
    // Predicated region
    $region10: #{tpu_custom_call.1} parent=1 // pred_check
      _
    $region11: #{tpu_custom_call.1} parent=1 // pred_check_branch
      %26 = sbr.rel (0) target = $region13
    $region12: #{tpu_custom_call.1} parent=1 // pred_region
      %s28 = ssub.s32 256, 256
      %29 = vsyncadd [#allocation6], %s28
      %s31 = sshll.u32 [#allocation5], 4
      %s32 = int_to_ptr.vmem [resolvable:$true] %s31
      %34 = dma.hbm_to_vmem [thread:$0]  %s2, 256, %s32, [#allocation6]
    $region13: #{tpu_custom_call.1} parent=1 // pred_fallthru
      _
    // Predicated region
    $region14: #{tpu_custom_call.1} parent=1 // pred_check
      _
    $region15: #{tpu_custom_call.1} parent=1 // pred_check_branch
      %36 = sbr.rel (0) target = $region17
    $region16: #{tpu_custom_call.1} parent=1 // pred_region
      %37 = dma.done [#allocation3], 4096
    $region17: #{tpu_custom_call.1} parent=1 // pred_fallthru
      _
    // Predicated region
    $region18: #{tpu_custom_call.1} parent=1 // pred_check
      _
    $region19: #{tpu_custom_call.1} parent=1 // pred_check_branch
      %39 = sbr.rel (0) target = $region21
    $region20: #{tpu_custom_call.1} parent=1 // pred_region
      %40 = dma.done [#allocation6], 256
    $region21: #{tpu_custom_call.1} parent=1 // pred_fallthru
      _
    %v41 = vld [vmem:[#allocation5] sm:$0xff]
    %v42 = vld [vmem:[#allocation5 + $0x8] sm:$0xff]
    %v43 = vld [vmem:[#allocation2] sm:$0xff]
    %v44 = vld [vmem:[#allocation2 + $0x8] sm:$0xff]
    %v45 = vld [vmem:[#allocation2 + $0x10] sm:$0xff]
    %v46 = vld [vmem:[#allocation2 + $0x18] sm:$0xff]
    %v47 = vld [vmem:[#allocation2 + $0x20] sm:$0xff]
    %v48 = vld [vmem:[#allocation2 + $0x28] sm:$0xff]
    %v49 = vld [vmem:[#allocation2 + $0x30] sm:$0xff]
    %v50 = vld [vmem:[#allocation2 + $0x38] sm:$0xff]
    %v51 = vld [vmem:[#allocation2 + $0x40] sm:$0xff]
    %v52 = vld [vmem:[#allocation2 + $0x48] sm:$0xff]
    %v53 = vld [vmem:[#allocation2 + $0x50] sm:$0xff]
    %v54 = vld [vmem:[#allocation2 + $0x58] sm:$0xff]
    %v55 = vld [vmem:[#allocation2 + $0x60] sm:$0xff]
    %v56 = vld [vmem:[#allocation2 + $0x68] sm:$0xff]
    %v57 = vld [vmem:[#allocation2 + $0x70] sm:$0xff]
    %v58 = vld [vmem:[#allocation2 + $0x78] sm:$0xff]
    %v59 = vld [vmem:[#allocation2 + $0x80] sm:$0xff]
    %v60 = vld [vmem:[#allocation2 + $0x88] sm:$0xff]
    %v61 = vld [vmem:[#allocation2 + $0x90] sm:$0xff]
    %v62 = vld [vmem:[#allocation2 + $0x98] sm:$0xff]
    %v63 = vld [vmem:[#allocation2 + $0xa0] sm:$0xff]
    %v64 = vld [vmem:[#allocation2 + $0xa8] sm:$0xff]
    %v65 = vld [vmem:[#allocation2 + $0xb0] sm:$0xff]
    %v66 = vld [vmem:[#allocation2 + $0xb8] sm:$0xff]
    %v67 = vld [vmem:[#allocation2 + $0xc0] sm:$0xff]
    %v68 = vld [vmem:[#allocation2 + $0xc8] sm:$0xff]
    %v69 = vld [vmem:[#allocation2 + $0xd0] sm:$0xff]
    %v70 = vld [vmem:[#allocation2 + $0xd8] sm:$0xff]
    %v71 = vld [vmem:[#allocation2 + $0xe0] sm:$0xff]
    %v72 = vld [vmem:[#allocation2 + $0xe8] sm:$0xff]
    %v73 = vld [vmem:[#allocation2 + $0xf0] sm:$0xff]
    %v74 = vld [vmem:[#allocation2 + $0xf8] sm:$0xff]
    %75 = vmatprep.subr.mxu0 0.0
    %76 = vmatpush1.msra.mxu0 %v43
    %77 = vmatprep.subr.mxu0 0.0
    %78 = vmatpush1.msra.mxu0 %v44
    %79 = vmatprep.subr.mxu0 0.0
    %80 = vmatpush1.msra.mxu0 %v45
    %81 = vmatprep.subr.mxu0 0.0
    %82 = vmatpush1.msra.mxu0 %v46
    %83 = vmatprep.subr.mxu0 0.0
    %84 = vmatpush1.msra.mxu0 %v47
    %85 = vmatprep.subr.mxu0 0.0
    %86 = vmatpush1.msra.mxu0 %v48
    %87 = vmatprep.subr.mxu0 0.0
    %88 = vmatpush1.msra.mxu0 %v49
    %89 = vmatprep.subr.mxu0 0.0
    %90 = vmatpush1.msra.mxu0 %v50
    %91 = vmatprep.subr.mxu0 0.0
    %92 = vmatpush1.msra.mxu0 %v51
    %93 = vmatprep.subr.mxu0 0.0
    %94 = vmatpush1.msra.mxu0 %v52
    %95 = vmatprep.subr.mxu0 0.0
    %96 = vmatpush1.msra.mxu0 %v53
    %97 = vmatprep.subr.mxu0 0.0
    %98 = vmatpush1.msra.mxu0 %v54
    %99 = vmatprep.subr.mxu0 0.0
    %100 = vmatpush1.msra.mxu0 %v55
    %101 = vmatprep.subr.mxu0 0.0
    %102 = vmatpush1.msra.mxu0 %v56
    %103 = vmatprep.subr.mxu0 0.0
    %104 = vmatpush1.msra.mxu0 %v57
    %105 = vmatprep.subr.mxu0 0.0
    %106 = vmatpush1.msra.mxu0 %v58
    %107 = vmatprep.subr.mxu0 0.0
    %108 = vmatpush1.msra.mxu0 %v59
    %109 = vmatprep.subr.mxu0 0.0
    %110 = vmatpush1.msra.mxu0 %v60
    %111 = vmatprep.subr.mxu0 0.0
    %112 = vmatpush1.msra.mxu0 %v61
    %113 = vmatprep.subr.mxu0 0.0
    %114 = vmatpush1.msra.mxu0 %v62
    %115 = vmatprep.subr.mxu0 0.0
    %116 = vmatpush1.msra.mxu0 %v63
    %117 = vmatprep.subr.mxu0 0.0
    %118 = vmatpush1.msra.mxu0 %v64
    %119 = vmatprep.subr.mxu0 0.0
    %120 = vmatpush1.msra.mxu0 %v65
    %121 = vmatprep.subr.mxu0 0.0
    %122 = vmatpush1.msra.mxu0 %v66
    %123 = vmatprep.subr.mxu0 0.0
    %124 = vmatpush1.msra.mxu0 %v67
    %125 = vmatprep.subr.mxu0 0.0
    %126 = vmatpush1.msra.mxu0 %v68
    %127 = vmatprep.subr.mxu0 0.0
    %128 = vmatpush1.msra.mxu0 %v69
    %129 = vmatprep.subr.mxu0 0.0
    %130 = vmatpush1.msra.mxu0 %v70
    %131 = vmatprep.subr.mxu0 0.0
    %132 = vmatpush1.msra.mxu0 %v71
    %133 = vmatprep.subr.mxu0 0.0
    %134 = vmatpush1.msra.mxu0 %v72
    %135 = vmatprep.subr.mxu0 0.0
    %136 = vmatpush1.msra.mxu0 %v73
    %137 = vmatprep.subr.mxu0 0.0
    %138 = vmatpush1.msra.mxu0 %v74
    %139 = vmatprep.mubr.f32.mxu0 %v42
    %140 = vmatmul.mubr.f32.gmra.mrb[0].mxu0 %v41
    %v141 = vpop.f32.mrb[0].mxu0
    %v142 = vadd.f32 0.0, %v141
    %v143 = vpop.f32.mrb[0].mxu0
    %144 = vdwg.mxu0
    %v145 = vld [vmem:[%s1] sm:$0x1]
    %v147 = vlaneseq
    %v148 = vshrl.u32 %v147, 7
    %v149 = vsub.s32 0, %v148
    %v150 = vrot.slane %v145, %v149
    %v152 = vmul.f32 %v142, %v150
    %153 = vst [vmem:[#allocation7] sm:$0xff] %v152
    // Predicated region
    $region22: #{tpu_custom_call.1} parent=1 // pred_check
      _
    $region23: #{tpu_custom_call.1} parent=1 // pred_check_branch
      %155 = sbr.rel (0) target = $region25
    $region24: #{tpu_custom_call.1} parent=1 // pred_region
      %s157 = ssub.s32 128, 128
      %158 = vsyncadd [#allocation4], %s157
      %s160 = sshll.u32 [#allocation7], 4
      %s161 = int_to_ptr.vmem [resolvable:$true] %s160
      %163 = dma.vmem_to_hbm [thread:$0]  %s161, 128, %s3, [#allocation4]
    $region25: #{tpu_custom_call.1} parent=1 // pred_fallthru
      _
    // Predicated region
    $region26: #{tpu_custom_call.1} parent=1 // pred_check
      _
    $region27: #{tpu_custom_call.1} parent=1 // pred_check_branch
      %165 = sbr.rel (0) target = $region29
    $region28: #{tpu_custom_call.1} parent=1 // pred_region
      %166 = dma.done [#allocation4], 128
    $region29: #{tpu_custom_call.1} parent=1 // pred_fallthru
      _
    %167 = vsyncpa [#allocation3], 1
    %168 = vsyncpa [#allocation6], 1
    %169 = vsyncpa [#allocation4], 1

</llo_original>
